<compile_context>
chip_gen: v5e
topology: v5e:2x2
jax: 0.10.0
libtpu: 0.0.40
codegen_flags: <defaults>
</compile_context>

<pallas_src>
import functools

import jax
import jax.numpy as jnp
from jax.experimental import pallas as pl
from jax.experimental.pallas import tpu as pltpu

LANES = 128      # vreg lane width
SUBLANES = 16    # row-tile granularity (16 also covers bf16 sublane packing)


def _focal_loss_kernel(pred_ref, true_ref, out_ref, *, gamma, alpha,
                       n_valid, blk_elems, steps_per_core,
                       first_masked_block, needs_mask):
    c = pl.program_id(0)          # core-split axis ("parallel")
    j = pl.program_id(1)          # reduction axis ("arbitrary")

    # The (8, LANES) output block doubles as the accumulator: its block index
    # ignores j, so it stays resident in VMEM across the whole reduction axis.
    @pl.when(j == 0)
    def _():
        out_ref[...] = jnp.zeros_like(out_ref)

    x = pred_ref[...].astype(jnp.float32)
    t = true_ref[...].astype(jnp.float32)

    # One shared transcendental: e = exp(-|x|) feeds both the stable BCE term
    # and the sigmoid.
    e = jnp.exp(-jnp.abs(x))
    d = 1.0 + e
    # 1/(1+e): approx EUP reciprocal + one Newton step (rel. error ~ eps^2).
    r = pl.reciprocal(d, approx=True)
    inv_1pe = r * (2.0 - d * r)

    # BCEWithLogitsLoss(reduction='none'), numerically stable form:
    #   bce = max(x, 0) - x*t + log(1 + exp(-|x|))
    bce = jnp.maximum(x, 0.0) - x * t + jnp.log1p(e)

    # sigmoid(x) = 1/(1+e) for x >= 0, e/(1+e) for x < 0   (e = exp(-|x|))
    pred_prob = jnp.where(x >= 0.0, inv_1pe, e * inv_1pe)

    # z = 1 - p_t = t - p*(2t - 1)  (constant-folded); alpha folds at trace.
    z = t - pred_prob * (2.0 * t - 1.0)
    alpha_factor = (1.0 - alpha) + t * (2.0 * alpha - 1.0)
    if gamma == 1.5:
        modulating = z * jnp.sqrt(z)   # z**1.5 without pow; sqrt(0) == 0 is fine
    elif gamma == 2.0:
        modulating = z * z
    else:
        modulating = z ** gamma
    loss = bce * (alpha_factor * modulating)

    blk_rows, lanes = loss.shape

    def _accumulate(vals):
        # (blk_rows, 128) -> (8, 128): layout-preserving reshape + vreg adds.
        out_ref[...] += jnp.sum(vals.reshape(blk_rows // 8, 8, lanes), axis=0)

    if not needs_mask:
        _accumulate(loss)
    else:
        gblk = c * steps_per_core + j   # intended (unclamped) global block idx

        @pl.when(gblk < first_masked_block)
        def _():
            _accumulate(loss)

        @pl.when(gblk >= first_masked_block)
        def _():
            row = jax.lax.broadcasted_iota(jnp.int32, (blk_rows, lanes), 0)
            lane = jax.lax.broadcasted_iota(jnp.int32, (blk_rows, lanes), 1)
            gidx = gblk * blk_elems + row * lanes + lane
            # Select (not multiply-by-mask) so garbage/Inf/NaN in padded or
            # over-covered tails cannot propagate.
            _accumulate(jnp.where(gidx < n_valid, loss, 0.0))


def focal_loss(pred, true, *, gamma=1.5, alpha=0.25, reduction="mean", tm=2048):
    """FocalLoss(nn.BCEWithLogitsLoss()) forward over all elements."""
    assert pred.shape == true.shape
    n = int(pred.size)
    assert n > 0

    pred_flat = pred.reshape(-1)
    true_flat = true.reshape(-1)

    # View the flattened data as (rows, 128). Only shapes whose flattened size
    # is not lane-aligned (or is smaller than one 16x128 tile) pay a pad copy.
    if n % LANES == 0 and (n // LANES) >= SUBLANES:
        rows = n // LANES
    else:
        padded = pl.cdiv(n, SUBLANES * LANES) * (SUBLANES * LANES)
        pred_flat = jnp.pad(pred_flat, (0, padded - n))
        true_flat = jnp.pad(true_flat, (0, padded - n))
        rows = padded // LANES
    pred2d = pred_flat.reshape(rows, LANES)
    true2d = true_flat.reshape(rows, LANES)

    # Row tile: multiple of 16 sublanes, capped to the data size.
    tm = max(SUBLANES, min(tm, (rows // SUBLANES) * SUBLANES))
    tm = (tm // SUBLANES) * SUBLANES
    nblocks = pl.cdiv(rows, tm)

    # Shard the row reduction across both TensorCores (v7x).  Only worth it
    # when the over-coverage waste (<= one extra block) is small; it is a
    # sequential no-op on single-TC chips (v5e/v6e).
    nc = 2 if nblocks >= 8 else 1
    steps_per_core = pl.cdiv(nblocks, nc)
    total_blocks = nc * steps_per_core

    blk_elems = tm * LANES
    first_masked = n // blk_elems            # first block not entirely valid
    needs_mask = first_masked < total_blocks

    def _in_map(c, j):
        # Clamp over-covering grid cells onto the last real block; their
        # contribution is masked to zero inside the kernel.
        return (jnp.minimum(c * steps_per_core + j, nblocks - 1), 0)

    kernel = functools.partial(
        _focal_loss_kernel, gamma=gamma, alpha=alpha, n_valid=n,
        blk_elems=blk_elems, steps_per_core=steps_per_core,
        first_masked_block=first_masked, needs_mask=needs_mask)

    partials = pl.pallas_call(
        kernel,
        out_shape=jax.ShapeDtypeStruct((nc * 8, LANES), jnp.float32),
        grid_spec=pltpu.PrefetchScalarGridSpec(
            num_scalar_prefetch=0,
            grid=(nc, steps_per_core),
            in_specs=[
                pl.BlockSpec((tm, LANES), _in_map),
                pl.BlockSpec((tm, LANES), _in_map),
            ],
            out_specs=pl.BlockSpec((8, LANES), lambda c, j: (c, 0)),
        ),
        compiler_params=pltpu.CompilerParams(
            dimension_semantics=("parallel", "arbitrary"),
        ),
    )(pred2d, true2d)

    total = jnp.sum(partials)
    if reduction == "mean":       # default of nn.BCEWithLogitsLoss
        return total * (1.0 / float(n))
    if reduction == "sum":
        return total
    # TODO(synk): reduction='none' (full elementwise loss tensor) not implemented.
    raise NotImplementedError("reduction must be 'mean' or 'sum'")


def _focal_loss_ref(pred, true, gamma=1.5, alpha=0.25):
    x = pred.astype(jnp.float32)
    t = true.astype(jnp.float32)
    bce = jnp.maximum(x, 0.0) - x * t + jnp.log1p(jnp.exp(-jnp.abs(x)))
    p = jax.nn.sigmoid(x)
    p_t = t * p + (1 - t) * (1 - p)
    af = t * alpha + (1 - t) * (1 - alpha)
    mf = (1.0 - p_t) ** gamma
    return jnp.mean(bce * af * mf)


if __name__ == "__main__":
    # FocalLoss(nn.BCEWithLogitsLoss(), gamma=1.5, alpha=0.25) — no learnable params.
    key = jax.random.PRNGKey(0)
    k1, k2, k3, k4 = jax.random.split(key, 4)

    # Primary: NCHW logits/targets; lane-aligned (no pad), single-block path.
    shape = (2, 4, 16, 16)
    pred = jax.random.normal(k1, shape, dtype=jnp.float32)
    true = jax.random.bernoulli(k2, 0.3, shape).astype(jnp.float32)
    out = jax.block_until_ready(focal_loss(pred, true, gamma=1.5, alpha=0.25))
    ref = _focal_loss_ref(pred, true)
    assert jnp.allclose(out, ref, rtol=1e-4, atol=1e-6), (out, ref)

    # Secondary: ragged shape exercising the pad+mask path, multi-block grid,
    # the clamped over-coverage block, and the two-core parallel split.
    shape2 = (2, 7, 35, 36)   # 17640 elements -> 9 blocks of 16x128 at tm=16
    pred2 = jax.random.normal(k3, shape2, dtype=jnp.float32)
    true2 = jax.random.bernoulli(k4, 0.3, shape2).astype(jnp.float32)
    out2 = jax.block_until_ready(focal_loss(pred2, true2, tm=16))
    ref2 = _focal_loss_ref(pred2, true2)
    assert jnp.allclose(out2, ref2, rtol=1e-4, atol=1e-6), (out2, ref2)

    print("KERNEL_OK")
</pallas_src>

<mosaic_0001>
module attributes {stable_mosaic.version = 11 : i64} {
  func.func @_focal_loss_kernel(%arg0: i32, %arg1: i32, %arg2: memref<16x128xf32, #tpu.memory_space<vmem>>, %arg3: memref<16x128xf32, #tpu.memory_space<vmem>>, %arg4: memref<8x128xf32, #tpu.memory_space<vmem>>) attributes {dimension_semantics = [#tpu.dimension_semantics<parallel>, #tpu.dimension_semantics<arbitrary>], iteration_bounds = array<i64: 1, 1>, scalar_prefetch = 0 : i64, scratch_operands = 0 : i64, tpu.core_type = #tpu.core_type<tc>, window_params = [{transform_indices = @transform_0, window_bounds = array<i64: 16, 128>}, {transform_indices = @transform_1, window_bounds = array<i64: 16, 128>}, {transform_indices = @transform_2, window_bounds = array<i64: 8, 128>}]} {
    %c0_i32 = arith.constant 0 : i32
    %0 = arith.cmpi eq, %arg1, %c0_i32 : i32
    %1 = arith.extui %0 : i1 to i32
    %c0_i32_0 = arith.constant 0 : i32
    %2 = arith.cmpi ne, %1, %c0_i32_0 : i32
    scf.if %2 {
      %cst_17 = arith.constant 0.000000e+00 : f32
      %45 = vector.broadcast %cst_17 : f32 to vector<8x128xf32>
      %c0_18 = arith.constant 0 : index
      %c0_19 = arith.constant 0 : index
      %46 = vector.load %arg4[%c0_18, %c0_19] : memref<8x128xf32, #tpu.memory_space<vmem>>, vector<8x128xf32>
      tpu.vector_store %arg4[%c0_18, %c0_19], %45 {strides = array<i32>} : memref<8x128xf32, #tpu.memory_space<vmem>>, vector<8x128xf32>,
    } else {
    }
    %c0 = arith.constant 0 : index
    %c0_1 = arith.constant 0 : index
    %3 = vector.load %arg2[%c0, %c0_1] : memref<16x128xf32, #tpu.memory_space<vmem>>, vector<16x128xf32>
    %c0_2 = arith.constant 0 : index
    %c0_3 = arith.constant 0 : index
    %4 = vector.load %arg3[%c0_2, %c0_3] : memref<16x128xf32, #tpu.memory_space<vmem>>, vector<16x128xf32>
    %5 = math.absf %3 : vector<16x128xf32>
    %cst = arith.constant 0.000000e+00 : f32
    %6 = vector.broadcast %cst : f32 to vector<16x128xf32>
    %7 = arith.subf %6, %5 : vector<16x128xf32>
    %8 = math.exp %7 : vector<16x128xf32>
    %cst_4 = arith.constant 1.000000e+00 : f32
    %9 = vector.broadcast %cst_4 : f32 to vector<16x128xf32>
    %10 = arith.addf %9, %8 : vector<16x128xf32>
    %11 = tpu.reciprocal %10 {approx = true} : vector<16x128xf32> -> vector<16x128xf32>
    %12 = arith.mulf %10, %11 : vector<16x128xf32>
    %cst_5 = arith.constant 2.000000e+00 : f32
    %13 = vector.broadcast %cst_5 : f32 to vector<16x128xf32>
    %14 = arith.subf %13, %12 : vector<16x128xf32>
    %15 = arith.mulf %11, %14 : vector<16x128xf32>
    %cst_6 = arith.constant 0.000000e+00 : f32
    %16 = vector.broadcast %cst_6 : f32 to vector<16x128xf32>
    %17 = arith.maximumf %3, %16 : vector<16x128xf32>
    %18 = arith.mulf %3, %4 : vector<16x128xf32>
    %19 = arith.subf %17, %18 : vector<16x128xf32>
    %20 = math.log1p %8 : vector<16x128xf32>
    %21 = arith.addf %19, %20 : vector<16x128xf32>
    %cst_7 = arith.constant 0.000000e+00 : f32
    %22 = vector.broadcast %cst_7 : f32 to vector<16x128xf32>
    %23 = arith.cmpf oge, %3, %22 : vector<16x128xf32>
    %24 = arith.mulf %8, %15 : vector<16x128xf32>
    %25 = arith.select %23, %15, %24 : vector<16x128xi1>, vector<16x128xf32>
    %cst_8 = arith.constant 2.000000e+00 : f32
    %26 = vector.broadcast %cst_8 : f32 to vector<16x128xf32>
    %27 = arith.mulf %26, %4 : vector<16x128xf32>
    %cst_9 = arith.constant 1.000000e+00 : f32
    %28 = vector.broadcast %cst_9 : f32 to vector<16x128xf32>
    %29 = arith.subf %27, %28 : vector<16x128xf32>
    %30 = arith.mulf %25, %29 : vector<16x128xf32>
    %31 = arith.subf %4, %30 : vector<16x128xf32>
    %cst_10 = arith.constant -5.000000e-01 : f32
    %32 = vector.broadcast %cst_10 : f32 to vector<16x128xf32>
    %33 = arith.mulf %4, %32 : vector<16x128xf32>
    %cst_11 = arith.constant 7.500000e-01 : f32
    %34 = vector.broadcast %cst_11 : f32 to vector<16x128xf32>
    %35 = arith.addf %34, %33 : vector<16x128xf32>
    %36 = math.sqrt %31 : vector<16x128xf32>
    %37 = arith.mulf %31, %36 : vector<16x128xf32>
    %38 = arith.mulf %35, %37 : vector<16x128xf32>
    %39 = arith.mulf %21, %38 : vector<16x128xf32>
    %c0_12 = arith.constant 0 : index
    %c0_13 = arith.constant 0 : index
    %40 = vector.load %arg4[%c0_12, %c0_13] : memref<8x128xf32, #tpu.memory_space<vmem>>, vector<8x128xf32>
    %41 = vector.shape_cast %39 : vector<16x128xf32> to vector<2x8x128xf32>
    %cst_14 = arith.constant dense<0.000000e+00> : vector<8x128xf32>
    %42 = vector.multi_reduction <add>, %41, %cst_14 [0] : vector<2x8x128xf32> to vector<8x128xf32>
    %43 = arith.addf %40, %42 : vector<8x128xf32>
    %c0_15 = arith.constant 0 : index
    %c0_16 = arith.constant 0 : index
    %44 = vector.load %arg4[%c0_15, %c0_16] : memref<8x128xf32, #tpu.memory_space<vmem>>, vector<8x128xf32>
    tpu.vector_store %arg4[%c0_15, %c0_16], %43 {strides = array<i32>} : memref<8x128xf32, #tpu.memory_space<vmem>>, vector<8x128xf32>,
    return
  }
  func.func @transform_0(%arg0: i32, %arg1: i32) -> (i32, i32) {
    %c1_i32 = arith.constant 1 : i32
    %0 = arith.muli %arg0, %c1_i32 : i32
    %1 = arith.addi %0, %arg1 : i32
    %c0_i32 = arith.constant 0 : i32
    %2 = arith.minsi %1, %c0_i32 : i32
    %c0_i32_0 = arith.constant 0 : i32
    %c0_i32_1 = arith.constant 0 : i32
    return %2, %c0_i32_0 : i32, i32
  }
  func.func @transform_1(%arg0: i32, %arg1: i32) -> (i32, i32) {
    %c1_i32 = arith.constant 1 : i32
    %0 = arith.muli %arg0, %c1_i32 : i32
    %1 = arith.addi %0, %arg1 : i32
    %c0_i32 = arith.constant 0 : i32
    %2 = arith.minsi %1, %c0_i32 : i32
    %c0_i32_0 = arith.constant 0 : i32
    %c0_i32_1 = arith.constant 0 : i32
    return %2, %c0_i32_0 : i32, i32
  }
  func.func @transform_2(%arg0: i32, %arg1: i32) -> (i32, i32) {
    %c0_i32 = arith.constant 0 : i32
    %c0_i32_0 = arith.constant 0 : i32
    return %arg0, %c0_i32 : i32, i32
  }
}

</mosaic_0001>

<llo_original>
// kernel: tpu_custom_call.1
$region0: #{tpu_custom_call.1}
  #allocation0 [shape = 'u32[]', space=smem, size = 0x4, offset = 0x4, fixed_abs, tag = 'smem constant byte address 0x4 - core index']
  #allocation1 [shape = 'u32[72,128]{1,0:T(1,128)}', space=vmem, size = 0x9000, scoped, tag = 'internal scratch']
  %s0 = inlined_call_operand.hbm [shape: f32[16,128], index: 0, kind: input, shape index: {}]
  %s1 = inlined_call_operand.hbm [shape: f32[16,128], index: 1, kind: input, shape index: {}]
  %s2 = inlined_call_operand.hbm [shape: f32[8,128], index: 2, kind: output, shape index: {}]
  %s3 = sld [smem:[#allocation0]]
  $region30: #{tpu_custom_call.1} parent=0
    _
  %s5 = ssub.s32 1, %s3
  %s6 = scalar_select 0, %s5, %s3
  $region1: #{tpu_custom_call.1} parent=0
    #allocation2 [shape = 'u8[8192]{0}', space=vmem, size = 0x2000, scoped, tag = 'input window, operand 0, single buffered']
    #allocation3 [shape = 's32[1]{0}', space=sflag, size = 0x4, scoped, tag = 'scoped memory for tpu_custom_call.1']
    #allocation4 [shape = 's32[1]{0}', space=sflag, size = 0x4, scoped, tag = 'scoped memory for tpu_custom_call.1']
    #allocation5 [shape = 'u8[8192]{0}', space=vmem, size = 0x2000, scoped, tag = 'input window, operand 1, single buffered']
    #allocation6 [shape = 's32[1]{0}', space=sflag, size = 0x4, scoped, tag = 'scoped memory for tpu_custom_call.1']
    #allocation7 [shape = 'u8[4096]{0}', space=vmem, size = 0x1000, scoped, tag = 'output window, operand 0, single buffered']
    %7 = vsyncpa [#allocation3], 0
    %8 = vsyncpa [#allocation6], 0
    %9 = vsyncpa [#allocation4], 0
    // Predicated region
    $region2: #{tpu_custom_call.1} parent=1 // pred_check
      _
    $region3: #{tpu_custom_call.1} parent=1 // pred_check_branch
      %11 = sbr.rel (0) target = $region5
    $region4: #{tpu_custom_call.1} parent=1 // pred_region
      %s12 = sadd.s32 0, 0
      %p13 = scmp.lt.s32.totalorder %s12, 0
      %s14 = scalar_select %p13, %s12, 0
      %s15 = smul.u32 2, %s14
      %17 = vsyncadd [#allocation3], 0
      %s18 = smul.addr %s15, 8
      %s19 = scalar_lea.hbm %s0, %s18
      %s20 = sshll.u32 %s19, 4
      %s21 = int_to_ptr.hbm [resolvable:$true] %s20
      %s22 = sshll.u32 [#allocation2], 4
      %s23 = int_to_ptr.vmem [resolvable:$true] %s22
      %28 = dma.hbm_to_vmem [thread:$0]  %s21, 256, %s23, [#allocation3], 128, 128, 8
    $region5: #{tpu_custom_call.1} parent=1 // pred_fallthru
      _
    // Predicated region
    $region6: #{tpu_custom_call.1} parent=1 // pred_check
      _
    $region7: #{tpu_custom_call.1} parent=1 // pred_check_branch
      %30 = sbr.rel (0) target = $region9
    $region8: #{tpu_custom_call.1} parent=1 // pred_region
      %s31 = sadd.s32 0, 0
      %p32 = scmp.lt.s32.totalorder %s31, 0
      %s33 = scalar_select %p32, %s31, 0
      %s34 = smul.u32 2, %s33
      %36 = vsyncadd [#allocation6], 0
      %s37 = smul.addr %s34, 8
      %s38 = scalar_lea.hbm %s1, %s37
      %s39 = sshll.u32 %s38, 4
      %s40 = int_to_ptr.hbm [resolvable:$true] %s39
      %s41 = sshll.u32 [#allocation5], 4
      %s42 = int_to_ptr.vmem [resolvable:$true] %s41
      %47 = dma.hbm_to_vmem [thread:$0]  %s40, 256, %s42, [#allocation6], 128, 128, 8
    $region9: #{tpu_custom_call.1} parent=1 // pred_fallthru
      _
    // Predicated region
    $region10: #{tpu_custom_call.1} parent=1 // pred_check
      _
    $region11: #{tpu_custom_call.1} parent=1 // pred_check_branch
      %49 = sbr.rel (0) target = $region13
    $region12: #{tpu_custom_call.1} parent=1 // pred_region
      %51 = dma.done [#allocation3], 256
    $region13: #{tpu_custom_call.1} parent=1 // pred_fallthru
      _
    // Predicated region
    $region14: #{tpu_custom_call.1} parent=1 // pred_check
      _
    $region15: #{tpu_custom_call.1} parent=1 // pred_check_branch
      %53 = sbr.rel (0) target = $region17
    $region16: #{tpu_custom_call.1} parent=1 // pred_region
      %55 = dma.done [#allocation6], 256
    $region17: #{tpu_custom_call.1} parent=1 // pred_fallthru
      _
    %s56 = sadd.s32 0, 0
    %p57 = scmp.lt.s32.totalorder %s56, 0
    %s58 = scalar_select %p57, %s56, 0
    %s59 = smul.u32 2, %s58
    %s60 = sadd.s32 0, 0
    %p61 = scmp.lt.s32.totalorder %s60, 0
    %s62 = scalar_select %p61, %s60, 0
    %s63 = smul.u32 2, %s62
    %p64 = scmp.eq.s32.totalorder 0, 0
    // Predicated region
    $region18: #{tpu_custom_call.1} parent=1 // pred_check
      %p65 = pneg %p64
    $region19: #{tpu_custom_call.1} parent=1 // pred_check_branch
      %67 = sbr.rel (%p65) target = $region21
    $region20: #{tpu_custom_call.1} parent=1 // pred_region
      %68 = vst [vmem:[#allocation7] sm:$0xff] 0.0
    $region21: #{tpu_custom_call.1} parent=1 // pred_fallthru
      _
    %v69 = vld [vmem:[#allocation2] sm:$0xff]
    %v70 = vld [vmem:[#allocation2 + $0x8] sm:$0xff]
    %v71 = vld [vmem:[#allocation5] sm:$0xff]
    %v72 = vld [vmem:[#allocation5 + $0x8] sm:$0xff]
    %v73 = vand.u32 2147483647, %v69
    %v74 = vand.u32 2147483647, %v70
    %v75 = vsub.f32 0.0, %v73
    %v76 = vsub.f32 0.0, %v74
    %v77 = vmul.f32 %v75, 1.442695
    %v78 = vpow.pop %v77
    %v79 = vmul.f32 %v76, 1.442695
    %v80 = vpow.pop %v79
    %v81 = vadd.f32 %v78, 1.0
    %v82 = vadd.f32 %v80, 1.0
    %v83 = vrcp.pop %v81
    %v84 = vrcp.pop %v82
    %v85 = vmul.f32 %v81, %v83
    %v86 = vmul.f32 %v82, %v84
    %v87 = vsub.f32 2.0, %v85
    %v88 = vsub.f32 2.0, %v86
    %v89 = vmul.f32 %v83, %v87
    %v90 = vmul.f32 %v84, %v88
    %v91 = vmax.f32 %v69, 0.0
    %v92 = vmax.f32 %v70, 0.0
    %v93 = vmul.f32 %v69, %v71
    %v94 = vmul.f32 %v70, %v72
    %v95 = vsub.f32 %v91, %v93
    %v96 = vsub.f32 %v92, %v94
    %v97 = vadd.f32 %v78, 1.0
    %v98 = vlog2.pop %v97
    %v99 = vmul.f32 %v98, 0.6931472
    %v100 = vmul.f32 -0.5, %v78
    %v101 = vadd.f32 %v100, 1.0
    %v102 = vmul.f32 %v101, %v78
    %v103 = vand.u32 2147483647, %v78
    %vm104 = vcmp.lt.f32.partialorder %v103, 0.0004427343
    %v105 = vsel %vm104, %v102, %v99
    %v106 = vadd.f32 %v80, 1.0
    %v107 = vlog2.pop %v106
    %v108 = vmul.f32 %v107, 0.6931472
    %v109 = vmul.f32 -0.5, %v80
    %v110 = vadd.f32 %v109, 1.0
    %v111 = vmul.f32 %v110, %v80
    %v112 = vand.u32 2147483647, %v80
    %vm113 = vcmp.lt.f32.partialorder %v112, 0.0004427343
    %v114 = vsel %vm113, %v111, %v108
    %v115 = vadd.f32 %v95, %v105
    %v116 = vadd.f32 %v96, %v114
    %vm117 = vcmp.ge.f32.partialorder %v69, 0.0
    %vm118 = vcmp.ge.f32.partialorder %v70, 0.0
    %v119 = vmul.f32 %v78, %v89
    %v120 = vmul.f32 %v80, %v90
    %v121 = vsel %vm117, %v89, %v119
    %v122 = vsel %vm118, %v90, %v120
    %v123 = vmul.f32 %v71, 2.0
    %v124 = vmul.f32 %v72, 2.0
    %v125 = vsub.f32 %v123, 1.0
    %v126 = vsub.f32 %v124, 1.0
    %v127 = vmul.f32 %v121, %v125
    %v128 = vmul.f32 %v122, %v126
    %v129 = vsub.f32 %v71, %v127
    %v130 = vsub.f32 %v72, %v128
    %v131 = vmul.f32 %v71, -0.5
    %v132 = vmul.f32 %v72, -0.5
    %v133 = vadd.f32 %v131, 0.75
    %v134 = vadd.f32 %v132, 0.75
    %v135 = vrsqrt.pop %v129
    %v136 = vmul.f32 %v135, %v129
    %v137 = vmul.f32 %v136, %v135
    %v138 = vmul.f32 0.5, %v137
    %v139 = vsub.f32 1.5, %v138
    %v140 = vmul.f32 %v135, %v139
    %v141 = vmul.f32 %v129, %v140
    %vm142 = vcmp.eq.f32.partialorder %v129, inf
    %v143 = vsel %vm142, %v129, %v141
    %vm144 = vcmp.eq.f32.partialorder %v129, 0.0
    %v145 = vand.u32 %v129, 2147483648
    %v146 = vsel %vm144, %v145, %v143
    %v147 = vrsqrt.pop %v130
    %v148 = vmul.f32 %v147, %v130
    %v149 = vmul.f32 %v148, %v147
    %v150 = vmul.f32 0.5, %v149
    %v151 = vsub.f32 1.5, %v150
    %v152 = vmul.f32 %v147, %v151
    %v153 = vmul.f32 %v130, %v152
    %vm154 = vcmp.eq.f32.partialorder %v130, inf
    %v155 = vsel %vm154, %v130, %v153
    %vm156 = vcmp.eq.f32.partialorder %v130, 0.0
    %v157 = vand.u32 %v130, 2147483648
    %v158 = vsel %vm156, %v157, %v155
    %v159 = vmul.f32 %v129, %v146
    %v160 = vmul.f32 %v130, %v158
    %v161 = vmul.f32 %v133, %v159
    %v162 = vmul.f32 %v134, %v160
    %v163 = vmul.f32 %v115, %v161
    %v164 = vmul.f32 %v116, %v162
    %v165 = vld [vmem:[#allocation7] sm:$0xff]
    %v166 = vadd.f32 %v163, %v164
    %v167 = vadd.f32 %v165, %v166
    %168 = vst [vmem:[#allocation7] sm:$0xff] %v167
    // Predicated region
    $region22: #{tpu_custom_call.1} parent=1 // pred_check
      _
    $region23: #{tpu_custom_call.1} parent=1 // pred_check_branch
      %170 = sbr.rel (0) target = $region25
    $region24: #{tpu_custom_call.1} parent=1 // pred_region
      %172 = vsyncadd [#allocation4], 0
      %s174 = sshll.u32 [#allocation7], 4
      %s175 = int_to_ptr.vmem [resolvable:$true] %s174
      %s176 = sshll.u32 %s2, 4
      %s177 = int_to_ptr.hbm [resolvable:$true] %s176
      %179 = dma.vmem_to_hbm [thread:$0]  %s175, 128, %s177, [#allocation4]
    $region25: #{tpu_custom_call.1} parent=1 // pred_fallthru
      _
    // Predicated region
    $region26: #{tpu_custom_call.1} parent=1 // pred_check
      _
    $region27: #{tpu_custom_call.1} parent=1 // pred_check_branch
      %181 = sbr.rel (0) target = $region29
    $region28: #{tpu_custom_call.1} parent=1 // pred_region
      %183 = dma.done [#allocation4], 128
    $region29: #{tpu_custom_call.1} parent=1 // pred_fallthru
      _
    %184 = vsyncpa [#allocation3], 1
    %185 = vsyncpa [#allocation6], 1
    %186 = vsyncpa [#allocation4], 1

</llo_original>
